<compile_context>
chip_gen: v7x
topology: tpu7x:2x2x1
jax: 0.10.0
libtpu: 0.0.40
codegen_flags: <defaults>
</compile_context>

<pallas_src>
import functools
import math

import jax
import jax.numpy as jnp
import numpy as np
from jax.experimental import pallas as pl
from jax.experimental.pallas import tpu as pltpu


def _round_up(a, m):
    return (a + m - 1) // m * m


def _cdiv(a, m):
    return (a + m - 1) // m


def _is_two_core_chip():
    """True on chips where a 'parallel' grid axis shards across 2 TCs (v7x)."""
    try:
        kind = jax.devices()[0].device_kind.lower().replace(" ", "")
    except Exception:
        return False
    return ("v7" in kind) or ("tpu7" in kind)


def _contrast_kernel(x_ref, cls_ref, out_ref, *scratch, m, rows_blk, kd):
    """Grid step = (chunk c, batch-group block j, d tile k).

    Every step issues one (rows_blk x d_tile) Gram contribution on the MXU.
    Only on the last d tile of a block does the (now slim) epilogue run: turn
    the Gram matrix into pairwise squared distances and fold the masked pos /
    neg partial sums (reduced along axis 0 only) into the per-chunk output
    tile.  Final lane reduction and /count division happen in JAX.
    """
    j = pl.program_id(1)
    k = pl.program_id(2)

    @pl.when(jnp.logical_and(j == 0, k == 0))
    def _init_out():
        out_ref[...] = jnp.zeros_like(out_ref)

    # ---- Gram contribution on the MXU: g[i, r] += <x_i, x_r> over this d tile.
    # TODO(synk): verify in the bundle dump that dot_general with contracting
    # dims (1, 1) does not emit a per-step vxpose of the x tile; if it does,
    # feed a pre-transposed operand from the wrapper.
    x = x_ref[...]                                            # (rows_blk, d_tile)
    g_part = jax.lax.dot_general(
        x, x, (((1,), (1,)), ((), ())), preferred_element_type=jnp.float32)

    if kd == 1:
        gram_now = g_part
    else:
        acc_ref = scratch[0]

        @pl.when(k == 0)
        def _init_acc():
            acc_ref[...] = jnp.zeros_like(acc_ref)

        acc_ref[...] += g_part
        gram_now = None

    @pl.when(k == kd - 1)
    def _epilogue():
        g = gram_now if kd == 1 else acc_ref[...]             # (rows, rows) f32

        # squared norms = Gram diagonal (matches torch .diagonal()); the diag
        # selector is built in-registers once per block — no resident eye mask.
        ri = jax.lax.broadcasted_iota(jnp.int32, (rows_blk, rows_blk), 0)
        ci = jax.lax.broadcasted_iota(jnp.int32, (rows_blk, rows_blk), 1)
        diag = jnp.where(ri == ci, g, 0.0)
        sq_col = jnp.sum(diag, axis=1, keepdims=True)         # (rows, 1) ||x_i||^2
        sq_row = jnp.sum(diag, axis=0, keepdims=True)         # (1, rows) ||x_r||^2

        # pairwise squared distance, clamped at 0 (torch .clamp_(min=0))
        dist = jnp.maximum(sq_col + sq_row - 2.0 * g, 0.0)

        # streamed per-block pair classes: 1 = positive pair, 2 = negative pair
        cls = cls_ref[0]                                      # (rows, rows) f32
        pos_f = jnp.where(cls == 1.0, 1.0, 0.0)
        neg_f = jnp.where(cls == 2.0, 1.0, 0.0)

        neg_val = jnp.square(jnp.maximum(m - jnp.sqrt(dist + 1e-5), 0.0))

        # defer the scalar/lane reduction: accumulate (1, rows) partials into
        # the per-chunk output tile (sublane 0 = pos sum, sublane 1 = neg sum).
        part_pos = jnp.sum(pos_f * dist, axis=0, keepdims=True)       # (1, rows)
        part_neg = jnp.sum(neg_f * neg_val, axis=0, keepdims=True)    # (1, rows)
        sub = jax.lax.broadcasted_iota(jnp.int32, (1, 2, rows_blk), 1)
        out_ref[...] += jnp.where(sub == 0, part_pos[None], part_neg[None])


def all_pair_patch_contrast_loss(x, labels, npos, nneg, m=1.0):
    """JAX/Pallas equivalent of AllPairPatchContrastLoss.forward (forward only)."""
    n = npos + nneg
    b = x.shape[0] // n
    d = int(np.prod(x.shape[1:]))

    # bf16 stays bf16 for the MXU (f32 accumulate); everything else -> f32.
    if x.dtype not in (jnp.bfloat16, jnp.float32):
        x = x.astype(jnp.float32)
    itemsize = jnp.dtype(x.dtype).itemsize

    is_two_core = _is_two_core_chip()

    # ---- block geometry: ~128 MXU rows per Gram block, sublane-aligned ----
    sub = 16 if x.dtype == jnp.bfloat16 else 8      # bf16 packs 2 rows / sublane
    step = sub // math.gcd(n, sub)                  # smallest bblk with bblk*n % sub == 0
    tgt = max(1, 128 // n)                          # ~128 rows; raise to 256 on v6e/v7x
                                                    # only if profiling shows MXU-bound
    bblk = max(step, (tgt // step) * step)
    bblk = min(bblk, _round_up(b, step))            # don't over-pad tiny batches
    rows_blk = bblk * n

    total_blocks = _cdiv(b, bblk)
    num_chunks = min(2 if is_two_core else 1, total_blocks)  # megacore only on v7x
    bpc = _cdiv(total_blocks, num_chunks)
    total_blocks = num_chunks * bpc
    b_pad = total_blocks * bblk

    # ---- d tiling: keep rows_blk fixed; tile the contraction dim instead ----
    x_budget = (24 if is_two_core else 48) * 2**20  # double-buffered x bytes
    vmem_cap = (48 if is_two_core else 100) * 2**20
    max_d_tile = max(128, (x_budget // (2 * rows_blk * itemsize)) // 128 * 128)
    d_pad = _round_up(d, 128)
    if d_pad <= max_d_tile:
        d_tile, kd = d_pad, 1
    else:
        d_tile = int(max_d_tile)
        kd = _cdiv(d_pad, d_tile)
        d_pad = kd * d_tile

    # ---- pad & reshape x (zero rows / lanes don't change any dot product) ----
    xr = x.reshape(b * n, d)
    xr = jnp.pad(xr, ((0, (b_pad - b) * n), (0, d_pad - d)))

    # ---- all label work happens here, not in the kernel ----
    lab = labels.astype(jnp.float32).reshape(b, n)
    lab_sum = lab[:, :, None] + lab[:, None, :]                  # (b, n, n)
    tri = np.triu(np.ones((n, n), dtype=bool), 1)                # static
    pos_b = jnp.logical_and(tri[None], lab_sum == 2.0)
    neg_b = jnp.logical_and(tri[None], lab_sum == 1.0)
    cnt_pos = jnp.sum(pos_b).astype(jnp.float32)
    cnt_neg = jnp.sum(neg_b).astype(jnp.float32)

    # per-block pair-class mask (0 excluded / 1 pos / 2 neg), block-diagonal over
    # the bblk groups stacked into one Gram block; padded groups are all zero.
    cls_b = pos_b.astype(jnp.float32) + 2.0 * neg_b.astype(jnp.float32)
    cls_b = jnp.pad(cls_b, ((0, b_pad - b), (0, 0), (0, 0)))
    cls_b = cls_b.reshape(total_blocks, bblk, n, n)
    eye_g = jnp.eye(bblk, dtype=jnp.float32)
    cls_full = jnp.einsum("tgij,gh->tgihj", cls_b, eye_g)
    cls_full = cls_full.reshape(total_blocks, rows_blk, rows_blk)

    kernel = functools.partial(_contrast_kernel, m=float(m),
                               rows_blk=rows_blk, kd=kd)

    est = (2 * rows_blk * d_tile * itemsize               # double-buffered x block
           + 2 * rows_blk * rows_blk * 4                  # class-mask block (2-buffered)
           + (rows_blk * rows_blk * 4 if kd > 1 else 0)   # Gram scratch
           + 4 * 2**20)                                   # out tile / slack
    vmem_limit = int(min(vmem_cap, max(32 * 2**20, est)))

    scratch = [pltpu.VMEM((rows_blk, rows_blk), jnp.float32)] if kd > 1 else []

    out = pl.pallas_call(
        kernel,
        out_shape=jax.ShapeDtypeStruct((num_chunks, 2, rows_blk), jnp.float32),
        grid=(num_chunks, bpc, kd),
        in_specs=[
            # x tile: one DMA per grid step (k is the fastest axis)
            pl.BlockSpec((rows_blk, d_tile), lambda c, j, k: (c * bpc + j, k)),
            # class mask: constant over the d axis -> one DMA per block
            pl.BlockSpec((1, rows_blk, rows_blk),
                         lambda c, j, k: (c * bpc + j, 0, 0)),
        ],
        out_specs=pl.BlockSpec((1, 2, rows_blk), lambda c, j, k: (c, 0, 0)),
        scratch_shapes=scratch,
        compiler_params=pltpu.CompilerParams(
            dimension_semantics=("parallel", "arbitrary", "arbitrary"),
            vmem_limit_bytes=vmem_limit),
    )(xr, cls_full)

    sum_pos = jnp.sum(out[:, 0, :])
    sum_neg = jnp.sum(out[:, 1, :])
    # NOTE: NaN if a label configuration yields zero pos or neg pairs — this
    # matches the reference (mean over an empty selection) and is unguarded.
    return sum_pos / cnt_pos + sum_neg / cnt_neg


def reference_loss(x, labels, npos, nneg, m=1.0):
    """Pure-JAX reference mirroring the PyTorch forward."""
    n = npos + nneg
    b = x.shape[0] // n
    xr = x.reshape(b, n, -1).astype(jnp.float32)
    g = jnp.einsum("bnd,bmd->bnm", xr, xr)
    sq = jnp.diagonal(g, axis1=-2, axis2=-1)                     # (b, n)
    dist = jnp.maximum(sq[:, :, None] + sq[:, None, :] - 2.0 * g, 0.0)
    lab = labels.astype(jnp.float32).reshape(b, n)
    lab_sum = lab[:, :, None] + lab[:, None, :]
    tri = jnp.triu(jnp.ones((n, n), dtype=bool), 1)[None]
    pos = tri & (lab_sum == 2.0)
    neg = tri & (lab_sum == 1.0)
    loss_pos = jnp.sum(jnp.where(pos, dist, 0.0)) / jnp.sum(pos)
    neg_val = jnp.square(jnp.maximum(m - jnp.sqrt(dist + 1e-5), 0.0))
    loss_neg = jnp.sum(jnp.where(neg, neg_val, 0.0)) / jnp.sum(neg)
    return loss_pos + loss_neg


if __name__ == "__main__":
    npos, nneg, m = 4, 4, 1.0
    n = npos + nneg
    b = 2
    C, H, W = 4, 8, 8

    key = jax.random.PRNGKey(0)
    x = jax.random.normal(key, (b * n, C, H, W), dtype=jnp.float32) * 0.1

    # per group: npos patches labeled 1, nneg patches labeled 0
    labels = jnp.tile(
        jnp.concatenate([jnp.ones((npos,), jnp.float32),
                         jnp.zeros((nneg,), jnp.float32)]),
        (b,),
    )  # shape (b*n,)

    loss = all_pair_patch_contrast_loss(x, labels, npos, nneg, m)
    loss = jax.block_until_ready(loss)

    ref = reference_loss(x, labels, npos, nneg, m)
    assert jnp.isfinite(loss), "kernel produced non-finite loss"
    assert abs(float(loss) - float(ref)) < 1e-4 * max(1.0, abs(float(ref))), (
        f"mismatch: kernel={float(loss)} ref={float(ref)}")

    print("KERNEL_OK")
</pallas_src>

<mosaic_0001>
module attributes {stable_mosaic.version = 11 : i64} {
  func.func @_contrast_kernel(%arg0: i32, %arg1: i32, %arg2: i32, %arg3: memref<16x256xf32, #tpu.memory_space<vmem>>, %arg4: memref<1x16x16xf32, #tpu.memory_space<vmem>>, %arg5: memref<1x2x16xf32, #tpu.memory_space<vmem>>) attributes {dimension_semantics = [#tpu.dimension_semantics<parallel>, #tpu.dimension_semantics<arbitrary>, #tpu.dimension_semantics<arbitrary>], iteration_bounds = array<i64: 1, 1, 1>, scalar_prefetch = 0 : i64, scratch_operands = 0 : i64, tpu.core_type = #tpu.core_type<tc>, window_params = [{transform_indices = @transform_0, window_bounds = array<i64: 16, 256>}, {transform_indices = @transform_1, window_bounds = array<i64: 1, 16, 16>}, {transform_indices = @transform_2, window_bounds = array<i64: 1, 2, 16>}]} {
    %c0_i32 = arith.constant 0 : i32
    %0 = arith.cmpi eq, %arg1, %c0_i32 : i32
    %c0_i32_0 = arith.constant 0 : i32
    %1 = arith.cmpi eq, %arg2, %c0_i32_0 : i32
    %2 = arith.andi %0, %1 : i1
    %3 = arith.extui %2 : i1 to i32
    %c0_i32_1 = arith.constant 0 : i32
    %4 = arith.cmpi ne, %3, %c0_i32_1 : i32
    scf.if %4 {
      %cst_5 = arith.constant 0.000000e+00 : f32
      %10 = vector.broadcast %cst_5 : f32 to vector<1x2x16xf32>
      %c0_6 = arith.constant 0 : index
      %c0_7 = arith.constant 0 : index
      %c0_8 = arith.constant 0 : index
      %11 = vector.load %arg5[%c0_6, %c0_7, %c0_8] : memref<1x2x16xf32, #tpu.memory_space<vmem>>, vector<1x2x16xf32>
      tpu.vector_store %arg5[%c0_6, %c0_7, %c0_8], %10 {strides = array<i32>} : memref<1x2x16xf32, #tpu.memory_space<vmem>>, vector<1x2x16xf32>,
    } else {
    }
    %c0 = arith.constant 0 : index
    %c0_2 = arith.constant 0 : index
    %5 = vector.load %arg3[%c0, %c0_2] : memref<16x256xf32, #tpu.memory_space<vmem>>, vector<16x256xf32>
    %cst = arith.constant dense<0.000000e+00> : vector<16x16xf32>
    %6 = tpu.matmul %5, %5, %cst {dimension_numbers = #tpu.dot_dimension_numbers<[1], [1], [0], [0], [0, 0, 1, 0], [], []>} : vector<16x256xf32>, vector<16x256xf32>, vector<16x16xf32> -> vector<16x16xf32>
    %c0_i32_3 = arith.constant 0 : i32
    %7 = arith.cmpi eq, %arg2, %c0_i32_3 : i32
    %8 = arith.extui %7 : i1 to i32
    %c0_i32_4 = arith.constant 0 : i32
    %9 = arith.cmpi ne, %8, %c0_i32_4 : i32
    scf.if %9 {
      %10 = tpu.iota {dimensions = array<i32: 0>} : vector<16x16xi32>
      %11 = tpu.iota {dimensions = array<i32: 1>} : vector<16x16xi32>
      %12 = arith.cmpi eq, %10, %11 : vector<16x16xi32>
      %cst_5 = arith.constant 0.000000e+00 : f32
      %13 = vector.broadcast %cst_5 : f32 to vector<16x16xf32>
      %14 = arith.select %12, %6, %13 : vector<16x16xi1>, vector<16x16xf32>
      %cst_6 = arith.constant dense<0.000000e+00> : vector<16xf32>
      %15 = vector.multi_reduction <add>, %14, %cst_6 [1] : vector<16x16xf32> to vector<16xf32>
      %16 = vector.shape_cast %15 : vector<16xf32> to vector<16x1xf32>
      %cst_7 = arith.constant dense<0.000000e+00> : vector<16xf32>
      %17 = vector.multi_reduction <add>, %14, %cst_7 [0] : vector<16x16xf32> to vector<16xf32>
      %18 = vector.shape_cast %17 : vector<16xf32> to vector<1x16xf32>
      %19 = vector.broadcast %16 : vector<16x1xf32> to vector<16x16xf32>
      %20 = vector.broadcast %18 : vector<1x16xf32> to vector<16x16xf32>
      %21 = arith.addf %19, %20 : vector<16x16xf32>
      %cst_8 = arith.constant 2.000000e+00 : f32
      %22 = vector.broadcast %cst_8 : f32 to vector<16x16xf32>
      %23 = arith.mulf %22, %6 : vector<16x16xf32>
      %24 = arith.subf %21, %23 : vector<16x16xf32>
      %cst_9 = arith.constant 0.000000e+00 : f32
      %25 = vector.broadcast %cst_9 : f32 to vector<16x16xf32>
      %26 = arith.maximumf %24, %25 : vector<16x16xf32>
      %c0_10 = arith.constant 0 : index
      %c0_11 = arith.constant 0 : index
      %c0_12 = arith.constant 0 : index
      %27 = vector.load %arg4[%c0_10, %c0_11, %c0_12] : memref<1x16x16xf32, #tpu.memory_space<vmem>>, vector<1x16x16xf32>
      %28 = vector.shape_cast %27 : vector<1x16x16xf32> to vector<16x16xf32>
      %cst_13 = arith.constant 1.000000e+00 : f32
      %29 = vector.broadcast %cst_13 : f32 to vector<16x16xf32>
      %30 = arith.cmpf oeq, %28, %29 : vector<16x16xf32>
      %cst_14 = arith.constant 1.000000e+00 : f32
      %cst_15 = arith.constant 0.000000e+00 : f32
      %31 = vector.broadcast %cst_14 : f32 to vector<16x16xf32>
      %32 = vector.broadcast %cst_15 : f32 to vector<16x16xf32>
      %33 = arith.select %30, %31, %32 : vector<16x16xi1>, vector<16x16xf32>
      %cst_16 = arith.constant 2.000000e+00 : f32
      %34 = vector.broadcast %cst_16 : f32 to vector<16x16xf32>
      %35 = arith.cmpf oeq, %28, %34 : vector<16x16xf32>
      %cst_17 = arith.constant 1.000000e+00 : f32
      %cst_18 = arith.constant 0.000000e+00 : f32
      %36 = vector.broadcast %cst_17 : f32 to vector<16x16xf32>
      %37 = vector.broadcast %cst_18 : f32 to vector<16x16xf32>
      %38 = arith.select %35, %36, %37 : vector<16x16xi1>, vector<16x16xf32>
      %cst_19 = arith.constant 9.99999974E-6 : f32
      %39 = vector.broadcast %cst_19 : f32 to vector<16x16xf32>
      %40 = arith.addf %26, %39 : vector<16x16xf32>
      %41 = math.sqrt %40 : vector<16x16xf32>
      %cst_20 = arith.constant 1.000000e+00 : f32
      %42 = vector.broadcast %cst_20 : f32 to vector<16x16xf32>
      %43 = arith.subf %42, %41 : vector<16x16xf32>
      %cst_21 = arith.constant 0.000000e+00 : f32
      %44 = vector.broadcast %cst_21 : f32 to vector<16x16xf32>
      %45 = arith.maximumf %43, %44 : vector<16x16xf32>
      %46 = arith.mulf %45, %45 : vector<16x16xf32>
      %47 = arith.mulf %33, %26 : vector<16x16xf32>
      %cst_22 = arith.constant dense<0.000000e+00> : vector<16xf32>
      %48 = vector.multi_reduction <add>, %47, %cst_22 [0] : vector<16x16xf32> to vector<16xf32>
      %49 = vector.shape_cast %48 : vector<16xf32> to vector<1x16xf32>
      %50 = arith.mulf %38, %46 : vector<16x16xf32>
      %cst_23 = arith.constant dense<0.000000e+00> : vector<16xf32>
      %51 = vector.multi_reduction <add>, %50, %cst_23 [0] : vector<16x16xf32> to vector<16xf32>
      %52 = vector.shape_cast %51 : vector<16xf32> to vector<1x16xf32>
      %53 = tpu.iota {dimensions = array<i32: 1>} : vector<1x2x16xi32>
      %c0_24 = arith.constant 0 : index
      %c0_25 = arith.constant 0 : index
      %c0_26 = arith.constant 0 : index
      %54 = vector.load %arg5[%c0_24, %c0_25, %c0_26] : memref<1x2x16xf32, #tpu.memory_space<vmem>>, vector<1x2x16xf32>
      %c0_i32_27 = arith.constant 0 : i32
      %55 = vector.broadcast %c0_i32_27 : i32 to vector<1x2x16xi32>
      %56 = arith.cmpi eq, %53, %55 : vector<1x2x16xi32>
      %57 = vector.shape_cast %49 : vector<1x16xf32> to vector<1x1x16xf32>
      %58 = vector.shape_cast %52 : vector<1x16xf32> to vector<1x1x16xf32>
      %59 = vector.shape_cast %57 : vector<1x1x16xf32> to vector<1x1x16xf32>
      %60 = vector.broadcast %59 : vector<1x1x16xf32> to vector<1x2x16xf32>
      %61 = vector.shape_cast %58 : vector<1x1x16xf32> to vector<1x1x16xf32>
      %62 = vector.broadcast %61 : vector<1x1x16xf32> to vector<1x2x16xf32>
      %63 = arith.select %56, %60, %62 : vector<1x2x16xi1>, vector<1x2x16xf32>
      %64 = arith.addf %54, %63 : vector<1x2x16xf32>
      %c0_28 = arith.constant 0 : index
      %c0_29 = arith.constant 0 : index
      %c0_30 = arith.constant 0 : index
      %65 = vector.load %arg5[%c0_28, %c0_29, %c0_30] : memref<1x2x16xf32, #tpu.memory_space<vmem>>, vector<1x2x16xf32>
      tpu.vector_store %arg5[%c0_28, %c0_29, %c0_30], %64 {strides = array<i32>} : memref<1x2x16xf32, #tpu.memory_space<vmem>>, vector<1x2x16xf32>,
    } else {
    }
    return
  }
  func.func @transform_0(%arg0: i32, %arg1: i32, %arg2: i32) -> (i32, i32) {
    %c1_i32 = arith.constant 1 : i32
    %0 = arith.muli %arg0, %c1_i32 : i32
    %1 = arith.addi %0, %arg1 : i32
    %c0_i32 = arith.constant 0 : i32
    return %1, %arg2 : i32, i32
  }
  func.func @transform_1(%arg0: i32, %arg1: i32, %arg2: i32) -> (i32, i32, i32) {
    %c1_i32 = arith.constant 1 : i32
    %0 = arith.muli %arg0, %c1_i32 : i32
    %1 = arith.addi %0, %arg1 : i32
    %c0_i32 = arith.constant 0 : i32
    %c0_i32_0 = arith.constant 0 : i32
    %c0_i32_1 = arith.constant 0 : i32
    return %1, %c0_i32, %c0_i32_0 : i32, i32, i32
  }
  func.func @transform_2(%arg0: i32, %arg1: i32, %arg2: i32) -> (i32, i32, i32) {
    %c0_i32 = arith.constant 0 : i32
    %c0_i32_0 = arith.constant 0 : i32
    %c0_i32_1 = arith.constant 0 : i32
    return %arg0, %c0_i32, %c0_i32_0 : i32, i32, i32
  }
}

</mosaic_0001>

<llo_original>
// kernel: tpu_custom_call.1
$region0: #{tpu_custom_call.1}
  #allocation0 [shape = 'u32[]', space=smem, size = 0x4, offset = 0x4, fixed_abs, tag = 'smem constant byte address 0x4 - core index']
  #allocation1 [shape = 'u32[144,128]{1,0:T(1,128)}', space=vmem, size = 0x12000, scoped, tag = 'internal scratch']
  %s0 = inlined_call_operand.hbm [shape: f32[16,256], index: 0, kind: input, shape index: {}]
  %s1 = inlined_call_operand.hbm [shape: f32[1,16,16], index: 1, kind: input, shape index: {}]
  %s2 = inlined_call_operand.hbm [shape: f32[1,2,16], index: 2, kind: output, shape index: {}]
  %s3 = sld [smem:[#allocation0]]
  $region34: #{tpu_custom_call.1} parent=0
    _
  %s5 = ssub.s32 1, %s3
  %s6 = scalar_select 0, %s5, %s3
  $region1: #{tpu_custom_call.1} parent=0
    #allocation2 [shape = 'u8[16384]{0}', space=vmem, size = 0x4000, scoped, tag = 'input window, operand 0, single buffered']
    #allocation3 [shape = 's32[1]{0}', space=sflag, size = 0x4, scoped, tag = 'scoped memory for tpu_custom_call.1']
    #allocation4 [shape = 's32[1]{0}', space=sflag, size = 0x4, scoped, tag = 'scoped memory for tpu_custom_call.1']
    #allocation5 [shape = 'u8[8192]{0}', space=vmem, size = 0x2000, scoped, tag = 'input window, operand 1, single buffered']
    #allocation6 [shape = 's32[1]{0}', space=sflag, size = 0x4, scoped, tag = 'scoped memory for tpu_custom_call.1']
    #allocation7 [shape = 'u8[1024]{0}', space=vmem, size = 0x400, scoped, tag = 'output window, operand 0, single buffered']
    %7 = vsyncpa [#allocation3], 0
    %8 = vsyncpa [#allocation6], 0
    %9 = vsyncpa [#allocation4], 0
    // Predicated region
    $region2: #{tpu_custom_call.1} parent=1 // pred_check
      _
    $region3: #{tpu_custom_call.1} parent=1 // pred_check_branch
      %11 = sbr.rel (0) target = $region5
    $region4: #{tpu_custom_call.1} parent=1 // pred_region
      %s12 = sadd.s32 0, 0
      %s13 = smul.u32 2, %s12
      %s15 = ssub.s32 512, 512
      %16 = vsyncadd [#allocation3], %s15
      %s17 = smul.addr %s13, 2
      %s18 = smul.addr %s17, 128
      %s19 = scalar_lea.hbm %s0, %s18
      %s20 = sshll.u32 [#allocation2], 4
      %s21 = int_to_ptr.vmem [resolvable:$true] %s20
      %26 = dma.hbm_to_vmem [thread:$0]  %s19, 512, %s21, [#allocation3], 256, 256, 16
    $region5: #{tpu_custom_call.1} parent=1 // pred_fallthru
      _
    // Predicated region
    $region6: #{tpu_custom_call.1} parent=1 // pred_check
      _
    $region7: #{tpu_custom_call.1} parent=1 // pred_check_branch
      %28 = sbr.rel (0) target = $region9
    $region8: #{tpu_custom_call.1} parent=1 // pred_region
      %s29 = sadd.s32 0, 0
      %s31 = ssub.s32 256, 256
      %32 = vsyncadd [#allocation6], %s31
      %s33 = smul.addr %s29, 2
      %s34 = smul.addr %s33, 128
      %s35 = scalar_lea.hbm %s1, %s34
      %s36 = sshll.u32 [#allocation5], 4
      %s37 = int_to_ptr.vmem [resolvable:$true] %s36
      %42 = dma.hbm_to_vmem [thread:$0]  %s35, 256, %s37, [#allocation6], 128, 128, 8
    $region9: #{tpu_custom_call.1} parent=1 // pred_fallthru
      _
    // Predicated region
    $region10: #{tpu_custom_call.1} parent=1 // pred_check
      _
    $region11: #{tpu_custom_call.1} parent=1 // pred_check_branch
      %44 = sbr.rel (0) target = $region13
    $region12: #{tpu_custom_call.1} parent=1 // pred_region
      %45 = dma.done [#allocation3], 512
    $region13: #{tpu_custom_call.1} parent=1 // pred_fallthru
      _
    // Predicated region
    $region14: #{tpu_custom_call.1} parent=1 // pred_check
      _
    $region15: #{tpu_custom_call.1} parent=1 // pred_check_branch
      %47 = sbr.rel (0) target = $region17
    $region16: #{tpu_custom_call.1} parent=1 // pred_region
      %48 = dma.done [#allocation6], 256
    $region17: #{tpu_custom_call.1} parent=1 // pred_fallthru
      _
    %s49 = sadd.s32 0, 0
    %s50 = smul.u32 2, %s49
    %s51 = sadd.s32 0, 0
    %p52 = scmp.eq.s32.totalorder 0, 0
    %p53 = scmp.eq.s32.totalorder 0, 0
    %p54 = pnand %p52, %p53
    %p55 = pneg %p54
    // Predicated region
    $region18: #{tpu_custom_call.1} parent=1 // pred_check
      _
    $region19: #{tpu_custom_call.1} parent=1 // pred_check_branch
      %57 = sbr.rel (%p54) target = $region21
    $region20: #{tpu_custom_call.1} parent=1 // pred_region
      %vm58 = vcmask 123904
      %59 = vst.msk [vmem:[#allocation7] sm:$0x3] %vm58, 0.0
    $region21: #{tpu_custom_call.1} parent=1 // pred_fallthru
      _
    %v60 = vld [vmem:[#allocation2] sm:$0xff]
    %v61 = vld [vmem:[#allocation2 + $0x8] sm:$0xff]
    %v62 = vld [vmem:[#allocation2 + $0x10] sm:$0xff]
    %v63 = vld [vmem:[#allocation2 + $0x18] sm:$0xff]
    %64 = vmatprep.subr.mxu0 %v61
    %65 = vmatpush1.xpose.msra.mxu0 %v60
    %66 = vmatprep.subr.mxu0 %v63
    %67 = vmatpush1.xpose.msra.mxu0 %v62
    %68 = vmatprep.subr.mxu0 0.0
    %69 = vmatpush1.xpose.msra.mxu0 0.0
    %70 = vmatprep.subr.mxu0 0.0
    %71 = vmatpush1.xpose.msra.mxu0 0.0
    %72 = vmatprep.subr.mxu0 0.0
    %73 = vmatpush1.xpose.msra.mxu0 0.0
    %74 = vmatprep.subr.mxu0 0.0
    %75 = vmatpush1.xpose.msra.mxu0 0.0
    %76 = vmatprep.subr.mxu0 0.0
    %77 = vmatpush1.xpose.msra.mxu0 0.0
    %78 = vmatprep.subr.mxu0 0.0
    %79 = vmatpush1.xpose.msra.mxu0 0.0
    %80 = vmatprep.subr.mxu0 0.0
    %81 = vmatpush1.xpose.msra.mxu0 0.0
    %82 = vmatprep.subr.mxu0 0.0
    %83 = vmatpush1.xpose.msra.mxu0 0.0
    %84 = vmatprep.subr.mxu0 0.0
    %85 = vmatpush1.xpose.msra.mxu0 0.0
    %86 = vmatprep.subr.mxu0 0.0
    %87 = vmatpush1.xpose.msra.mxu0 0.0
    %88 = vmatprep.subr.mxu0 0.0
    %89 = vmatpush1.xpose.msra.mxu0 0.0
    %90 = vmatprep.subr.mxu0 0.0
    %91 = vmatpush1.xpose.msra.mxu0 0.0
    %92 = vmatprep.subr.mxu0 0.0
    %93 = vmatpush1.xpose.msra.mxu0 0.0
    %94 = vmatprep.subr.mxu0 0.0
    %95 = vmatpush1.xpose.msra.mxu0 0.0
    %96 = vmatprep.subr.mxu0 0.0
    %97 = vmatpush1.xpose.msra.mxu0 0.0
    %98 = vmatprep.subr.mxu0 0.0
    %99 = vmatpush1.xpose.msra.mxu0 0.0
    %100 = vmatprep.subr.mxu0 0.0
    %101 = vmatpush1.xpose.msra.mxu0 0.0
    %102 = vmatprep.subr.mxu0 0.0
    %103 = vmatpush1.xpose.msra.mxu0 0.0
    %104 = vmatprep.subr.mxu0 0.0
    %105 = vmatpush1.xpose.msra.mxu0 0.0
    %106 = vmatprep.subr.mxu0 0.0
    %107 = vmatpush1.xpose.msra.mxu0 0.0
    %108 = vmatprep.subr.mxu0 0.0
    %109 = vmatpush1.xpose.msra.mxu0 0.0
    %110 = vmatprep.subr.mxu0 0.0
    %111 = vmatpush1.xpose.msra.mxu0 0.0
    %112 = vmatprep.subr.mxu0 0.0
    %113 = vmatpush1.xpose.msra.mxu0 0.0
    %114 = vmatprep.subr.mxu0 0.0
    %115 = vmatpush1.xpose.msra.mxu0 0.0
    %116 = vmatprep.subr.mxu0 0.0
    %117 = vmatpush1.xpose.msra.mxu0 0.0
    %118 = vmatprep.subr.mxu0 0.0
    %119 = vmatpush1.xpose.msra.mxu0 0.0
    %120 = vmatprep.subr.mxu0 0.0
    %121 = vmatpush1.xpose.msra.mxu0 0.0
    %122 = vmatprep.subr.mxu0 0.0
    %123 = vmatpush1.xpose.msra.mxu0 0.0
    %124 = vmatprep.subr.mxu0 0.0
    %125 = vmatpush1.xpose.msra.mxu0 0.0
    %126 = vmatprep.subr.mxu0 0.0
    %127 = vmatpush1.xpose.msra.mxu0 0.0
    %128 = vmatprep.mubr.f32.mxu0 %v61
    %129 = vmatmul.mubr.f32.gmra.mrb[0].mxu0 %v60
    %v130 = vpop.f32.mrb[0].mxu0
    %v131 = vadd.f32 0.0, %v130
    %v132 = vpop.f32.mrb[0].mxu0
    %133 = vmatprep.mubr.f32.mxu0 %v63
    %134 = vmatmul.mubr.f32.gmra.mrb[0].mxu0 %v62
    %v135 = vpop.f32.mrb[0].mxu0
    %v136 = vadd.f32 0.0, %v135
    %v137 = vpop.f32.mrb[0].mxu0
    %138 = vdwg.mxu0
    // Predicated region
    $region22: #{tpu_custom_call.1} parent=1 // pred_check
      %p139 = pneg %p53
    $region23: #{tpu_custom_call.1} parent=1 // pred_check_branch
      %141 = sbr.rel (%p139) target = $region25
    $region24: #{tpu_custom_call.1} parent=1 // pred_region
      %v142 = vlaneseq
      %v143 = vshrl.u32 %v142, 7
      %v144 = vadd.s32 %v143, 8
      %v145 = vlaneseq
      %v146 = vand.u32 %v145, 127
      %vm147 = vcmp.eq.s32.totalorder %v143, %v146
      %vm148 = vcmp.eq.s32.totalorder %v144, %v146
      %v149 = vsel %vm147, %v131, 0.0
      %v150 = vsel %vm148, %v136, 0.0
      %vm151 = vcmask 130048
      %v152 = vsel %vm151, %v149, 0.0
      %153 = vadd.xlane.f32.xlu0 %v152
      %v154 = vpop.xlane.xlu0 %153
      %v155 = vsel %vm151, %v150, 0.0
      %156 = vadd.xlane.f32.xlu0 %v155
      %v157 = vpop.xlane.xlu0 %156
      %v158 = vadd.f32 %v152, %v155
      %v159 = vrot.slane %v158, 4
      %v160 = vadd.f32 %v158, %v159
      %v161 = vrot.slane %v160, 2
      %v162 = vadd.f32 %v160, %v161
      %v163 = vrot.slane %v162, 1
      %v164 = vadd.f32 %v162, %v163
      %v165 = vadd.f32 %v154, %v164
      %v166 = vadd.f32 %v157, %v164
      %v167 = vmul.f32 %v131, 2.0
      %v168 = vmul.f32 %v136, 2.0
      %v169 = vsub.f32 %v165, %v167
      %v170 = vsub.f32 %v166, %v168
      %v171 = vmax.f32 %v169, 0.0
      %v172 = vmax.f32 %v170, 0.0
      %v173 = vld [vmem:[#allocation5] sm:$0xff]
      %v174 = vld [vmem:[#allocation5 + $0x8] sm:$0xff]
      %vm175 = vcmp.eq.f32.partialorder %v173, 1.0
      %vm176 = vcmp.eq.f32.partialorder %v174, 1.0
      %v177 = vsel %vm175, 1.0, 0.0
      %v178 = vsel %vm176, 1.0, 0.0
      %vm179 = vcmp.eq.f32.partialorder %v173, 2.0
      %vm180 = vcmp.eq.f32.partialorder %v174, 2.0
      %v181 = vsel %vm179, 1.0, 0.0
      %v182 = vsel %vm180, 1.0, 0.0
      %v183 = vadd.f32 %v171, 1e-05
      %v184 = vadd.f32 %v172, 1e-05
      %v185 = vrsqrt.pop %v183
      %v186 = vmul.f32 %v183, %v185
      %vm187 = vcmp.eq.f32.partialorder %v183, inf
      %v188 = vsel %vm187, %v183, %v186
      %vm189 = vcmp.eq.f32.partialorder %v183, 0.0
      %v190 = vand.u32 %v183, 2147483648
      %v191 = vsel %vm189, %v190, %v188
      %v192 = vrsqrt.pop %v184
      %v193 = vmul.f32 %v184, %v192
      %vm194 = vcmp.eq.f32.partialorder %v184, inf
      %v195 = vsel %vm194, %v184, %v193
      %vm196 = vcmp.eq.f32.partialorder %v184, 0.0
      %v197 = vand.u32 %v184, 2147483648
      %v198 = vsel %vm196, %v197, %v195
      %v199 = vsub.f32 1.0, %v191
      %v200 = vsub.f32 1.0, %v198
      %v201 = vmax.f32 %v199, 0.0
      %v202 = vmax.f32 %v200, 0.0
      %v203 = vmul.f32 %v201, %v201
      %v204 = vmul.f32 %v202, %v202
      %v205 = vmul.f32 %v177, %v171
      %v206 = vmul.f32 %v178, %v172
      %v207 = vsel %vm151, %v205, 0.0
      %v208 = vsel %vm151, %v206, 0.0
      %v209 = vadd.f32 %v207, %v208
      %v210 = vrot.slane %v209, 4
      %v211 = vadd.f32 %v209, %v210
      %v212 = vrot.slane %v211, 2
      %v213 = vadd.f32 %v211, %v212
      %v214 = vrot.slane %v213, 1
      %v215 = vadd.f32 %v213, %v214
      %v216 = vmul.f32 %v181, %v203
      %v217 = vmul.f32 %v182, %v204
      %v218 = vsel %vm151, %v216, 0.0
      %v219 = vsel %vm151, %v217, 0.0
      %v220 = vadd.f32 %v218, %v219
      %v221 = vrot.slane %v220, 4
      %v222 = vadd.f32 %v220, %v221
      %v223 = vrot.slane %v222, 2
      %v224 = vadd.f32 %v222, %v223
      %v225 = vrot.slane %v224, 1
      %v226 = vadd.f32 %v224, %v225
      %v227 = vld [vmem:[#allocation7] sm:$0x3]
      %vm228 = vcmp.eq.s32.totalorder %v143, 0
      %v229 = vsel %vm228, %v215, %v226
      %v230 = vadd.f32 %v227, %v229
      %vm231 = vcmask 123904
      %232 = vst.msk [vmem:[#allocation7] sm:$0x3] %vm231, %v230
    $region25: #{tpu_custom_call.1} parent=1 // pred_fallthru
      _
    // Predicated region
    $region26: #{tpu_custom_call.1} parent=1 // pred_check
      _
    $region27: #{tpu_custom_call.1} parent=1 // pred_check_branch
      %234 = sbr.rel (0) target = $region29
    $region28: #{tpu_custom_call.1} parent=1 // pred_region
      %s236 = ssub.s32 32, 32
      %237 = vsyncadd [#allocation4], %s236
      %s239 = sshll.u32 [#allocation7], 4
      %s240 = int_to_ptr.vmem [resolvable:$true] %s239
      %242 = dma.vmem_to_hbm [thread:$0]  %s240, 32, %s2, [#allocation4]
    $region29: #{tpu_custom_call.1} parent=1 // pred_fallthru
      _
    // Predicated region
    $region30: #{tpu_custom_call.1} parent=1 // pred_check
      _
    $region31: #{tpu_custom_call.1} parent=1 // pred_check_branch
      %244 = sbr.rel (0) target = $region33
    $region32: #{tpu_custom_call.1} parent=1 // pred_region
      %245 = dma.done [#allocation4], 32
    $region33: #{tpu_custom_call.1} parent=1 // pred_fallthru
      _
    %246 = vsyncpa [#allocation3], 1
    %247 = vsyncpa [#allocation6], 1
    %248 = vsyncpa [#allocation4], 1

</llo_original>
